<compile_context>
chip_gen: v6e
topology: v6e:2x2x1
jax: 0.10.0
libtpu: 0.0.40
codegen_flags: <defaults>
</compile_context>

<pallas_src>
import functools

import numpy as np
import jax
import jax.numpy as jnp
from jax.experimental import pallas as pl
from jax.experimental.pallas import tpu as pltpu

# Sparse4D anchor field indices: [X, Y, Z, W, L, H, SIN_YAW, COS_YAW, VX, VY, VZ]
X, Y, Z, W, L, H, SIN_YAW, COS_YAW, VX = 0, 1, 2, 3, 4, 5, 6, 7, 8
NUM_GEOM = 8          # rows X..COS_YAW used by the non-temporal forward
ANCHOR_DIM = 11

# 7 fixed key-point scales (center + 6 face centers), as used in Sparse4D.
DEFAULT_FIX_SCALE = (
    (0.0, 0.0, 0.0),
    (0.45, 0.0, 0.0),
    (-0.45, 0.0, 0.0),
    (0.0, 0.45, 0.0),
    (0.0, -0.45, 0.0),
    (0.0, 0.0, 0.45),
    (0.0, 0.0, -0.45),
)


def _round_up(x, m):
    return (x + m - 1) // m * m


def _choose_tile(total, anchor_tile, min_steps):
    """Pick the anchor-axis tile (multiple of 128).

    Prefer a tile that divides `total` exactly (avoids the full-array pad pass)
    while keeping >= min_steps grid steps (>= 2 per v7x TensorCore); otherwise
    fall back to halving until the step-count floor is met (padded tail tile).
    """
    cap = max(128, _round_up(min(anchor_tile, total), 128))
    want = min(min_steps, max(1, total // 128))
    for cand in range(cap, 0, -128):
        if total % cand == 0 and total // cand >= want:
            return cand
    ta = cap
    while ta > 128 and pl.cdiv(total, ta) < want:
        ta = max(128, _round_up(ta // 2, 128))
    return ta


def _keypoints_kernel(*refs, nf_pad, lp_pad):
    """One anchor tile; channels-first, anchors on the lane axis.

    refs (lp_pad > 0): a_ref (8, TA), fs_ref (nf_pad, 3), f_ref (TA, D),
                       w_ref (3*lp_pad, D), b_ref (3*lp_pad, 1),
                       o_ref (3, nf_pad + lp_pad, TA)
    refs (lp_pad == 0): a_ref, fs_ref, o_ref
    """
    if lp_pad:
        a_ref, fs_ref, f_ref, w_ref, b_ref, o_ref = refs
    else:
        a_ref, fs_ref, o_ref = refs

    a = a_ref[...]                              # (8, TA) float32, one sublane tile
    ex = jnp.exp(a[W:W + 1])                    # (1, TA)
    ey = jnp.exp(a[L:L + 1])
    ez = jnp.exp(a[H:H + 1])
    cos = a[COS_YAW:COS_YAW + 1]
    sin = a[SIN_YAW:SIN_YAW + 1]
    cx, cy, cz = a[X:X + 1], a[Y:Y + 1], a[Z:Z + 1]

    # ---- fixed key points: tiny resident scale table, pure VPU ----
    fs = fs_ref[...]                            # (nf_pad, 3)
    fx = fs[:, 0:1] * ex                        # (nf_pad, TA)
    fy = fs[:, 1:2] * ey
    fz = fs[:, 2:3] * ez
    o_ref[0, 0:nf_pad, :] = cos * fx - sin * fy + cx
    o_ref[1, 0:nf_pad, :] = sin * fx + cos * fy + cy
    o_ref[2, 0:nf_pad, :] = fz + cz

    if lp_pad:
        # ---- learnable key points: MXU matmul over learnable rows only ----
        # feat stays in its natural (TA, D) layout; contract D of both operands.
        proj = jax.lax.dot_general(
            w_ref[...], f_ref[...],
            dimension_numbers=(((1,), (1,)), ((), ())),
            preferred_element_type=jnp.float32)             # (3*lp_pad, TA)
        s = jax.nn.sigmoid(proj + b_ref[...]) - 0.5
        kx = s[0:lp_pad] * ex                               # (lp_pad, TA)
        ky = s[lp_pad:2 * lp_pad] * ey
        kz = s[2 * lp_pad:3 * lp_pad] * ez
        o_ref[0, nf_pad:, :] = cos * kx - sin * ky + cx
        o_ref[1, nf_pad:, :] = sin * kx + cos * ky + cy
        o_ref[2, nf_pad:, :] = kz + cz


def sparse_box3d_keypoints(anchor, instance_feature=None, fc_w=None, fc_b=None,
                           fix_scale=DEFAULT_FIX_SCALE, num_learnable_pts=6,
                           *, anchor_tile=2048, min_grid_steps=4,
                           channels_first_output=False):
    """Forward pass (non-temporal branch) of SparseBox3DKeyPointsGenerator.

    anchor           : (bs, num_anchor, 11)
    instance_feature : (bs, num_anchor, D) or None  (dtype is used as-is; no cast)
    fc_w             : (D, 3*num_learnable_pts)  -- applied as feat @ W + b
                       (i.e. transpose of torch.nn.Linear's (out, in) weight)
    fc_b             : (3*num_learnable_pts,)
    returns          : (bs, num_anchor, num_pts, 3) float32, or the lane-dense
                       channels-first slab (3, num_pts, bs*num_anchor) if
                       channels_first_output=True (for fused consumers).
    """
    fix_scale = np.asarray(fix_scale, np.float32).reshape(-1, 3)
    bs, num_anchor = anchor.shape[:2]
    assert anchor.shape[-1] >= NUM_GEOM
    total = bs * num_anchor
    nf = fix_scale.shape[0]
    lp = int(num_learnable_pts) if instance_feature is not None else 0
    num_pts = nf + lp
    nf_pad = _round_up(nf, 8)
    lp_pad = _round_up(lp, 8) if lp > 0 else 0
    pp = nf_pad + lp_pad

    ta = _choose_tile(total, anchor_tile, min_grid_steps)
    total_pad = _round_up(total, ta)
    num_tiles = total_pad // ta
    pad = total_pad - total

    # ---- anchor: channels-first, only the 8 geometry rows (small stream) ----
    anchor_cf = anchor[..., :NUM_GEOM].reshape(total, NUM_GEOM).T.astype(jnp.float32)
    if pad:   # only when no exact-divisor tile exists (see _choose_tile)
        anchor_cf = jnp.pad(anchor_cf, ((0, 0), (0, pad)))

    # ---- fixed scales: tiny resident VMEM table (no logit folding) ----
    fs_host = np.zeros((nf_pad, 3), np.float32)
    fs_host[:nf] = fix_scale
    fs_in = jnp.asarray(fs_host)

    inputs = [anchor_cf, fs_in]
    in_specs = [
        pl.BlockSpec((NUM_GEOM, ta), lambda i: (0, i)),
        pl.BlockSpec((nf_pad, 3), lambda i: (0, 0)),        # resident
    ]
    blk_bytes = NUM_GEOM * ta * 4 + nf_pad * 3 * 4 + 3 * pp * ta * 4

    if lp_pad:
        d = instance_feature.shape[-1]
        feat2d = instance_feature.reshape(total, d)          # natural layout, no cast
        if pad:
            feat2d = jnp.pad(feat2d, ((0, pad), (0, 0)))
        # Coordinate-major weight rows, each coordinate group padded to lp_pad
        # with zero rows (sigmoid(0)-0.5 = 0 -> pad points are inert, dropped later).
        wt = jnp.asarray(fc_w).T                              # (3*lp, D)
        bt = jnp.asarray(fc_b).astype(jnp.float32)
        w_rows, b_rows = [], []
        for c in range(3):
            idx = np.arange(lp) * 3 + c                       # Linear output cols for coord c
            w_rows += [wt[idx], jnp.zeros((lp_pad - lp, d), wt.dtype)]
            b_rows += [bt[idx], jnp.zeros((lp_pad - lp,), jnp.float32)]
        w_aug = jnp.concatenate(w_rows).astype(feat2d.dtype)             # (3*lp_pad, D)
        b_aug = jnp.concatenate(b_rows)[:, None]                         # (3*lp_pad, 1)

        inputs += [feat2d, w_aug, b_aug]
        in_specs += [
            pl.BlockSpec((ta, d), lambda i: (i, 0)),
            pl.BlockSpec((3 * lp_pad, d), lambda i: (0, 0)),  # resident weight
            pl.BlockSpec((3 * lp_pad, 1), lambda i: (0, 0)),  # resident bias
        ]
        blk_bytes += (ta * d * feat2d.dtype.itemsize
                      + 3 * lp_pad * (d * w_aug.dtype.itemsize + 4))

    cp_kwargs = dict(dimension_semantics=("parallel",))
    if 2 * blk_bytes > 12 * 1024 * 1024:   # double-buffered footprint vs scoped default
        cp_kwargs["vmem_limit_bytes"] = min(int(2.5 * blk_bytes) + (4 << 20), 100 << 20)

    kernel = functools.partial(_keypoints_kernel, nf_pad=nf_pad, lp_pad=lp_pad)

    out_cf = pl.pallas_call(
        kernel,
        out_shape=jax.ShapeDtypeStruct((3, pp, total_pad), jnp.float32),
        grid_spec=pltpu.PrefetchScalarGridSpec(
            num_scalar_prefetch=0,
            grid=(num_tiles,),
            in_specs=in_specs,
            out_specs=pl.BlockSpec((3, pp, ta), lambda i: (0, 0, i)),
        ),
        compiler_params=pltpu.CompilerParams(**cp_kwargs),
    )(*inputs)

    # Drop pad anchors and pad point rows; keep everything inside the caller's
    # jit so the consumer (deformable aggregation) fuses this epilogue.
    sel = np.concatenate([np.arange(nf), nf_pad + np.arange(lp)]).astype(np.int32)
    out_cf = out_cf[:, :, :total]
    if not (sel.size == pp and np.array_equal(sel, np.arange(pp))):
        out_cf = out_cf[:, sel, :]
    if channels_first_output:
        return out_cf                                   # (3, num_pts, bs*num_anchor)
    # TODO(synk): temporal branch (T_cur2temp_list / timestamps) and the static
    # anchor_projection / distance helpers are not exercised by the default
    # forward (all temporal args None) and are left unimplemented.
    return out_cf.transpose(2, 1, 0).reshape(bs, num_anchor, num_pts, 3)


def _reference(anchor, feat, fc_w, fc_b, fix_scale, lp):
    """Pure-JAX reference mirroring the PyTorch forward."""
    fix_scale = jnp.asarray(np.asarray(fix_scale, np.float32).reshape(-1, 3))
    bs, na, _ = anchor.shape
    nf = fix_scale.shape[0]
    scale_fix = jnp.broadcast_to(fix_scale[None, None], (bs, na, nf, 3))
    proj = jnp.dot(feat, fc_w, precision=jax.lax.Precision.HIGHEST) + fc_b
    ls = jax.nn.sigmoid(proj).reshape(bs, na, lp, 3) - 0.5
    scale = jnp.concatenate([scale_fix, ls], axis=-2)
    whl = jnp.exp(anchor[..., jnp.array([W, L, H])])[:, :, None, :]
    kp = scale * whl
    cos = anchor[..., COS_YAW][..., None]
    sin = anchor[..., SIN_YAW][..., None]
    kx, ky, kz = kp[..., 0], kp[..., 1], kp[..., 2]
    rx = cos * kx - sin * ky + anchor[..., X][..., None]
    ry = sin * kx + cos * ky + anchor[..., Y][..., None]
    rz = kz + anchor[..., Z][..., None]
    return jnp.stack([rx, ry, rz], axis=-1)


if __name__ == "__main__":
    bs, num_anchor, embed_dims, num_learnable_pts = 2, 256, 32, 6

    key = jax.random.PRNGKey(0)
    k_pos, k_size, k_yaw, k_vel, k_feat, k_w, k_b = jax.random.split(key, 7)

    # Synthetic anchors: [x,y,z, log(w),log(l),log(h), sin,cos, vx,vy,vz]
    pos = jax.random.uniform(k_pos, (bs, num_anchor, 3), minval=-20.0, maxval=20.0)
    size = jax.random.uniform(k_size, (bs, num_anchor, 3), minval=-0.5, maxval=1.5)
    yaw = jax.random.uniform(k_yaw, (bs, num_anchor, 1), minval=-np.pi, maxval=np.pi)
    vel = jax.random.uniform(k_vel, (bs, num_anchor, 3), minval=-2.0, maxval=2.0)
    anchor = jnp.concatenate([pos, size, jnp.sin(yaw), jnp.cos(yaw), vel],
                             axis=-1).astype(jnp.float32)

    instance_feature = jax.random.normal(
        k_feat, (bs, num_anchor, embed_dims), dtype=jnp.float32)

    # Xavier-uniform Linear(embed_dims, 3*Lp) stored as (in, out); small bias.
    fan_in, fan_out = embed_dims, 3 * num_learnable_pts
    bound = float(np.sqrt(6.0 / (fan_in + fan_out)))
    fc_w = jax.random.uniform(k_w, (fan_in, fan_out),
                              minval=-bound, maxval=bound, dtype=jnp.float32)
    fc_b = 0.01 * jax.random.normal(k_b, (fan_out,), dtype=jnp.float32)

    # Jit the whole wrapper so the layout epilogue fuses with the kernel call.
    fwd = jax.jit(lambda a, f, w, b: sparse_box3d_keypoints(
        a, f, w, b, fix_scale=DEFAULT_FIX_SCALE,
        num_learnable_pts=num_learnable_pts))

    out = jax.block_until_ready(fwd(anchor, instance_feature, fc_w, fc_b))
    assert out.shape == (bs, num_anchor, 7 + num_learnable_pts, 3)

    ref = _reference(anchor, instance_feature, fc_w, fc_b,
                     DEFAULT_FIX_SCALE, num_learnable_pts)
    # Tolerance covers the small difference between the in-kernel MXU f32
    # matmul path and XLA's HIGHEST-precision f32 dot; geometry math is f32.
    np.testing.assert_allclose(np.asarray(out), np.asarray(ref),
                               rtol=2e-3, atol=2e-2)

    print("KERNEL_OK")
</pallas_src>

<mosaic_0001>
module attributes {stable_mosaic.version = 11 : i64} {
  func.func @_keypoints_kernel(%arg0: i32, %arg1: memref<8x128xf32, #tpu.memory_space<vmem>>, %arg2: memref<8x3xf32, #tpu.memory_space<vmem>>, %arg3: memref<128x32xf32, #tpu.memory_space<vmem>>, %arg4: memref<24x32xf32, #tpu.memory_space<vmem>>, %arg5: memref<24x1xf32, #tpu.memory_space<vmem>>, %arg6: memref<3x16x128xf32, #tpu.memory_space<vmem>>) attributes {dimension_semantics = [#tpu.dimension_semantics<parallel>], iteration_bounds = array<i64: 4>, scalar_prefetch = 0 : i64, scratch_operands = 0 : i64, tpu.core_type = #tpu.core_type<tc>, window_params = [{transform_indices = @transform_0, window_bounds = array<i64: 8, 128>}, {pipeline_mode = #tpu.pipeline_mode<synchronous>, transform_indices = @transform_1, window_bounds = array<i64: 8, 3>}, {transform_indices = @transform_2, window_bounds = array<i64: 128, 32>}, {pipeline_mode = #tpu.pipeline_mode<synchronous>, transform_indices = @transform_3, window_bounds = array<i64: 24, 32>}, {pipeline_mode = #tpu.pipeline_mode<synchronous>, transform_indices = @transform_4, window_bounds = array<i64: 24, 1>}, {transform_indices = @transform_5, window_bounds = array<i64: 3, 16, 128>}]} {
    %c0 = arith.constant 0 : index
    %c0_0 = arith.constant 0 : index
    %0 = vector.load %arg1[%c0, %c0_0] : memref<8x128xf32, #tpu.memory_space<vmem>>, vector<8x128xf32>
    %1 = vector.extract_strided_slice %0 {offsets = [3, 0], sizes = [1, 128], strides = [1, 1]} : vector<8x128xf32> to vector<1x128xf32>
    %2 = math.exp %1 : vector<1x128xf32>
    %3 = vector.extract_strided_slice %0 {offsets = [4, 0], sizes = [1, 128], strides = [1, 1]} : vector<8x128xf32> to vector<1x128xf32>
    %4 = math.exp %3 : vector<1x128xf32>
    %5 = vector.extract_strided_slice %0 {offsets = [5, 0], sizes = [1, 128], strides = [1, 1]} : vector<8x128xf32> to vector<1x128xf32>
    %6 = math.exp %5 : vector<1x128xf32>
    %7 = vector.extract_strided_slice %0 {offsets = [7, 0], sizes = [1, 128], strides = [1, 1]} : vector<8x128xf32> to vector<1x128xf32>
    %8 = vector.extract_strided_slice %0 {offsets = [6, 0], sizes = [1, 128], strides = [1, 1]} : vector<8x128xf32> to vector<1x128xf32>
    %9 = vector.extract_strided_slice %0 {offsets = [0, 0], sizes = [1, 128], strides = [1, 1]} : vector<8x128xf32> to vector<1x128xf32>
    %10 = vector.extract_strided_slice %0 {offsets = [1, 0], sizes = [1, 128], strides = [1, 1]} : vector<8x128xf32> to vector<1x128xf32>
    %11 = vector.extract_strided_slice %0 {offsets = [2, 0], sizes = [1, 128], strides = [1, 1]} : vector<8x128xf32> to vector<1x128xf32>
    %c0_1 = arith.constant 0 : index
    %c0_2 = arith.constant 0 : index
    %12 = vector.load %arg2[%c0_1, %c0_2] : memref<8x3xf32, #tpu.memory_space<vmem>>, vector<8x3xf32>
    %13 = vector.extract_strided_slice %12 {offsets = [0, 0], sizes = [8, 1], strides = [1, 1]} : vector<8x3xf32> to vector<8x1xf32>
    %14 = vector.broadcast %13 : vector<8x1xf32> to vector<8x128xf32>
    %15 = vector.broadcast %2 : vector<1x128xf32> to vector<8x128xf32>
    %16 = arith.mulf %14, %15 : vector<8x128xf32>
    %17 = vector.extract_strided_slice %12 {offsets = [0, 1], sizes = [8, 1], strides = [1, 1]} : vector<8x3xf32> to vector<8x1xf32>
    %18 = vector.broadcast %17 : vector<8x1xf32> to vector<8x128xf32>
    %19 = vector.broadcast %4 : vector<1x128xf32> to vector<8x128xf32>
    %20 = arith.mulf %18, %19 : vector<8x128xf32>
    %21 = vector.extract_strided_slice %12 {offsets = [0, 2], sizes = [8, 1], strides = [1, 1]} : vector<8x3xf32> to vector<8x1xf32>
    %22 = vector.broadcast %21 : vector<8x1xf32> to vector<8x128xf32>
    %23 = vector.broadcast %6 : vector<1x128xf32> to vector<8x128xf32>
    %24 = arith.mulf %22, %23 : vector<8x128xf32>
    %25 = vector.broadcast %7 : vector<1x128xf32> to vector<8x128xf32>
    %26 = arith.mulf %25, %16 : vector<8x128xf32>
    %27 = vector.broadcast %8 : vector<1x128xf32> to vector<8x128xf32>
    %28 = arith.mulf %27, %20 : vector<8x128xf32>
    %29 = arith.subf %26, %28 : vector<8x128xf32>
    %30 = vector.broadcast %9 : vector<1x128xf32> to vector<8x128xf32>
    %31 = arith.addf %29, %30 : vector<8x128xf32>
    %c0_3 = arith.constant 0 : index
    %c0_4 = arith.constant 0 : index
    %c0_5 = arith.constant 0 : index
    %32 = vector.load %arg6[%c0_3, %c0_4, %c0_5] : memref<3x16x128xf32, #tpu.memory_space<vmem>>, vector<1x8x128xf32>
    %33 = vector.shape_cast %32 : vector<1x8x128xf32> to vector<8x128xf32>
    %34 = vector.shape_cast %31 : vector<8x128xf32> to vector<1x8x128xf32>
    tpu.vector_store %arg6[%c0_3, %c0_4, %c0_5], %34 {strides = array<i32>} : memref<3x16x128xf32, #tpu.memory_space<vmem>>, vector<1x8x128xf32>,
    %35 = vector.broadcast %8 : vector<1x128xf32> to vector<8x128xf32>
    %36 = arith.mulf %35, %16 : vector<8x128xf32>
    %37 = vector.broadcast %7 : vector<1x128xf32> to vector<8x128xf32>
    %38 = arith.mulf %37, %20 : vector<8x128xf32>
    %39 = arith.addf %36, %38 : vector<8x128xf32>
    %40 = vector.broadcast %10 : vector<1x128xf32> to vector<8x128xf32>
    %41 = arith.addf %39, %40 : vector<8x128xf32>
    %c1 = arith.constant 1 : index
    %c0_6 = arith.constant 0 : index
    %c0_7 = arith.constant 0 : index
    %42 = vector.load %arg6[%c1, %c0_6, %c0_7] : memref<3x16x128xf32, #tpu.memory_space<vmem>>, vector<1x8x128xf32>
    %43 = vector.shape_cast %42 : vector<1x8x128xf32> to vector<8x128xf32>
    %44 = vector.shape_cast %41 : vector<8x128xf32> to vector<1x8x128xf32>
    tpu.vector_store %arg6[%c1, %c0_6, %c0_7], %44 {strides = array<i32>} : memref<3x16x128xf32, #tpu.memory_space<vmem>>, vector<1x8x128xf32>,
    %45 = vector.broadcast %11 : vector<1x128xf32> to vector<8x128xf32>
    %46 = arith.addf %24, %45 : vector<8x128xf32>
    %c2 = arith.constant 2 : index
    %c0_8 = arith.constant 0 : index
    %c0_9 = arith.constant 0 : index
    %47 = vector.load %arg6[%c2, %c0_8, %c0_9] : memref<3x16x128xf32, #tpu.memory_space<vmem>>, vector<1x8x128xf32>
    %48 = vector.shape_cast %47 : vector<1x8x128xf32> to vector<8x128xf32>
    %49 = vector.shape_cast %46 : vector<8x128xf32> to vector<1x8x128xf32>
    tpu.vector_store %arg6[%c2, %c0_8, %c0_9], %49 {strides = array<i32>} : memref<3x16x128xf32, #tpu.memory_space<vmem>>, vector<1x8x128xf32>,
    %c0_10 = arith.constant 0 : index
    %c0_11 = arith.constant 0 : index
    %50 = vector.load %arg4[%c0_10, %c0_11] : memref<24x32xf32, #tpu.memory_space<vmem>>, vector<24x32xf32>
    %c0_12 = arith.constant 0 : index
    %c0_13 = arith.constant 0 : index
    %51 = vector.load %arg3[%c0_12, %c0_13] : memref<128x32xf32, #tpu.memory_space<vmem>>, vector<128x32xf32>
    %cst = arith.constant dense<0.000000e+00> : vector<24x128xf32>
    %52 = tpu.matmul %50, %51, %cst {dimension_numbers = #tpu.dot_dimension_numbers<[1], [1], [0], [0], [0, 0, 1, 0], [], []>} : vector<24x32xf32>, vector<128x32xf32>, vector<24x128xf32> -> vector<24x128xf32>
    %c0_14 = arith.constant 0 : index
    %c0_15 = arith.constant 0 : index
    %53 = vector.load %arg5[%c0_14, %c0_15] : memref<24x1xf32, #tpu.memory_space<vmem>>, vector<24x1xf32>
    %54 = vector.broadcast %53 : vector<24x1xf32> to vector<24x128xf32>
    %55 = arith.addf %52, %54 : vector<24x128xf32>
    %56 = arith.negf %55 : vector<24x128xf32>
    %57 = math.exp %56 : vector<24x128xf32>
    %cst_16 = arith.constant 1.000000e+00 : f32
    %58 = vector.broadcast %cst_16 : f32 to vector<24x128xf32>
    %59 = arith.addf %58, %57 : vector<24x128xf32>
    %60 = arith.divf %58, %59 : vector<24x128xf32>
    %cst_17 = arith.constant 5.000000e-01 : f32
    %61 = vector.broadcast %cst_17 : f32 to vector<24x128xf32>
    %62 = arith.subf %60, %61 : vector<24x128xf32>
    %63 = vector.extract_strided_slice %62 {offsets = [0, 0], sizes = [8, 128], strides = [1, 1]} : vector<24x128xf32> to vector<8x128xf32>
    %64 = vector.broadcast %2 : vector<1x128xf32> to vector<8x128xf32>
    %65 = arith.mulf %63, %64 : vector<8x128xf32>
    %66 = vector.extract_strided_slice %62 {offsets = [8, 0], sizes = [8, 128], strides = [1, 1]} : vector<24x128xf32> to vector<8x128xf32>
    %67 = vector.broadcast %4 : vector<1x128xf32> to vector<8x128xf32>
    %68 = arith.mulf %66, %67 : vector<8x128xf32>
    %69 = vector.extract_strided_slice %62 {offsets = [16, 0], sizes = [8, 128], strides = [1, 1]} : vector<24x128xf32> to vector<8x128xf32>
    %70 = vector.broadcast %6 : vector<1x128xf32> to vector<8x128xf32>
    %71 = arith.mulf %69, %70 : vector<8x128xf32>
    %72 = vector.broadcast %7 : vector<1x128xf32> to vector<8x128xf32>
    %73 = arith.mulf %72, %65 : vector<8x128xf32>
    %74 = vector.broadcast %8 : vector<1x128xf32> to vector<8x128xf32>
    %75 = arith.mulf %74, %68 : vector<8x128xf32>
    %76 = arith.subf %73, %75 : vector<8x128xf32>
    %77 = vector.broadcast %9 : vector<1x128xf32> to vector<8x128xf32>
    %78 = arith.addf %76, %77 : vector<8x128xf32>
    %c0_18 = arith.constant 0 : index
    %c8 = arith.constant 8 : index
    %c0_19 = arith.constant 0 : index
    %79 = vector.load %arg6[%c0_18, %c8, %c0_19] : memref<3x16x128xf32, #tpu.memory_space<vmem>>, vector<1x8x128xf32>
    %80 = vector.shape_cast %79 : vector<1x8x128xf32> to vector<8x128xf32>
    %81 = vector.shape_cast %78 : vector<8x128xf32> to vector<1x8x128xf32>
    tpu.vector_store %arg6[%c0_18, %c8, %c0_19], %81 {strides = array<i32>} : memref<3x16x128xf32, #tpu.memory_space<vmem>>, vector<1x8x128xf32>,
    %82 = vector.broadcast %8 : vector<1x128xf32> to vector<8x128xf32>
    %83 = arith.mulf %82, %65 : vector<8x128xf32>
    %84 = vector.broadcast %7 : vector<1x128xf32> to vector<8x128xf32>
    %85 = arith.mulf %84, %68 : vector<8x128xf32>
    %86 = arith.addf %83, %85 : vector<8x128xf32>
    %87 = vector.broadcast %10 : vector<1x128xf32> to vector<8x128xf32>
    %88 = arith.addf %86, %87 : vector<8x128xf32>
    %c1_20 = arith.constant 1 : index
    %c8_21 = arith.constant 8 : index
    %c0_22 = arith.constant 0 : index
    %89 = vector.load %arg6[%c1_20, %c8_21, %c0_22] : memref<3x16x128xf32, #tpu.memory_space<vmem>>, vector<1x8x128xf32>
    %90 = vector.shape_cast %89 : vector<1x8x128xf32> to vector<8x128xf32>
    %91 = vector.shape_cast %88 : vector<8x128xf32> to vector<1x8x128xf32>
    tpu.vector_store %arg6[%c1_20, %c8_21, %c0_22], %91 {strides = array<i32>} : memref<3x16x128xf32, #tpu.memory_space<vmem>>, vector<1x8x128xf32>,
    %92 = vector.broadcast %11 : vector<1x128xf32> to vector<8x128xf32>
    %93 = arith.addf %71, %92 : vector<8x128xf32>
    %c2_23 = arith.constant 2 : index
    %c8_24 = arith.constant 8 : index
    %c0_25 = arith.constant 0 : index
    %94 = vector.load %arg6[%c2_23, %c8_24, %c0_25] : memref<3x16x128xf32, #tpu.memory_space<vmem>>, vector<1x8x128xf32>
    %95 = vector.shape_cast %94 : vector<1x8x128xf32> to vector<8x128xf32>
    %96 = vector.shape_cast %93 : vector<8x128xf32> to vector<1x8x128xf32>
    tpu.vector_store %arg6[%c2_23, %c8_24, %c0_25], %96 {strides = array<i32>} : memref<3x16x128xf32, #tpu.memory_space<vmem>>, vector<1x8x128xf32>,
    return
  }
  func.func @transform_0(%arg0: i32) -> (i32, i32) {
    %c0_i32 = arith.constant 0 : i32
    %c0_i32_0 = arith.constant 0 : i32
    return %c0_i32, %arg0 : i32, i32
  }
  func.func @transform_1(%arg0: i32) -> (i32, i32) {
    %c0_i32 = arith.constant 0 : i32
    %c0_i32_0 = arith.constant 0 : i32
    %c0_i32_1 = arith.constant 0 : i32
    return %c0_i32, %c0_i32_0 : i32, i32
  }
  func.func @transform_2(%arg0: i32) -> (i32, i32) {
    %c0_i32 = arith.constant 0 : i32
    %c0_i32_0 = arith.constant 0 : i32
    return %arg0, %c0_i32 : i32, i32
  }
  func.func @transform_3(%arg0: i32) -> (i32, i32) {
    %c0_i32 = arith.constant 0 : i32
    %c0_i32_0 = arith.constant 0 : i32
    %c0_i32_1 = arith.constant 0 : i32
    return %c0_i32, %c0_i32_0 : i32, i32
  }
  func.func @transform_4(%arg0: i32) -> (i32, i32) {
    %c0_i32 = arith.constant 0 : i32
    %c0_i32_0 = arith.constant 0 : i32
    %c0_i32_1 = arith.constant 0 : i32
    return %c0_i32, %c0_i32_0 : i32, i32
  }
  func.func @transform_5(%arg0: i32) -> (i32, i32, i32) {
    %c0_i32 = arith.constant 0 : i32
    %c0_i32_0 = arith.constant 0 : i32
    %c0_i32_1 = arith.constant 0 : i32
    return %c0_i32, %c0_i32_0, %arg0 : i32, i32, i32
  }
}

</mosaic_0001>

<llo_original>
// kernel: _lambda_.1
$region0: #{_lambda_.1}
  #allocation0 [shape = 'u32[]', space=smem, size = 0x4, offset = 0x4, fixed_abs, tag = 'smem constant byte address 0x4 - core index']
  #allocation1 [shape = 'u32[144,128]{1,0:T(1,128)}', space=vmem, size = 0x12000, scoped, tag = 'internal scratch']
  %s0 = inlined_call_operand.vmem [shape: f32[8,512], index: 0, kind: input, shape index: {}]
  %s1 = inlined_call_operand.vmem [shape: f32[8,3], index: 1, kind: input, shape index: {}]
  %s2 = inlined_call_operand.vmem [shape: f32[512,32], index: 2, kind: input, shape index: {}]
  %s3 = inlined_call_operand.vmem [shape: f32[24,32], index: 3, kind: input, shape index: {}]
  %s4 = inlined_call_operand.vmem [shape: f32[24,1], index: 4, kind: input, shape index: {}]
  %s5 = inlined_call_operand.vmem [shape: f32[3,16,512], index: 5, kind: output, shape index: {}]
  %s6 = sld [smem:[#allocation0]]
  $region87: #{_lambda_.1} parent=0
    _
  %s8 = ssub.s32 1, %s6
  %s9 = scalar_select 0, %s8, %s6
  $region1: #{_lambda_.1} parent=0
    #allocation2 [shape = 'u8[49152]{0}', space=vmem, size = 0xc000, scoped, tag = 'output window, operand 0']
    loop: start=0, step=1, limit=6
    $region2: #{_lambda_.1} parent=1 // loop_pre_header
      _
    $region3: #{_lambda_.1} parent=1 // loop_header
      %s11 = sphi 0, %s15
      %p12 = scmp.ge.s32.totalorder %s11, 6
      %s21 = sphi 0, %s23
      %s24 = sphi 0, %s21
      %s25 = sphi 0, %s24
      %s41 = sphi 0, %s25
      %s45 = sphi 0, %s45
      %s47 = sphi 0, %s45
      %s48 = sphi 0, %s47
      %s62 = sphi 0, %s48
      %s68 = sphi 0, %s70
      %s71 = sphi 0, %s68
      %s72 = sphi 0, %s71
      %s88 = sphi 0, %s72
      %s92 = sphi 0, %s92
      %s94 = sphi 0, %s92
      %s95 = sphi 0, %s94
      %s109 = sphi 0, %s95
      %s113 = sphi 0, %s113
      %s115 = sphi 0, %s113
      %s116 = sphi 0, %s115
      %s130 = sphi 0, %s116
      %s136 = sphi 0, %s138
      %s139 = sphi 0, %s136
      %s140 = sphi 0, %s139
      %s156 = sphi 0, %s140
    $region4: #{_lambda_.1} parent=1 // loop_header_branch
      %14 = sbr.rel (%p12) target = $region8
    $region5: #{_lambda_.1} parent=1 // loop_body
      %s16 = ssub.s32 %s11, 1
      %s17 = ssub.s32 %s11, 2
      %s18 = sadd.s32 %s11, 1
      %s19 = ssub.s32 %s11, %s18
      %p20 = scmp.eq.s32.totalorder %s19, 0
      %s22 = sadd.s32 %s21, 1
      %s23 = scalar_select %p20, %s21, %s22
      %p26 = pneg %p20
      %p27 = scmp.eq.s32.totalorder %s11, 3
      %p28 = por %p26, %p27
      %p29 = scmp.ne.s32.totalorder %s21, %s24
      %p30 = scmp.eq.s32.totalorder %s11, 0
      %p31 = por %p29, %p30
      %p32 = scmp.ne.s32.totalorder %s21, %s24
      %p33 = scmp.eq.s32.totalorder %s16, 3
      %p34 = por %p32, %p33
      %p35 = scmp.ne.s32.totalorder %s24, %s25
      %p36 = scmp.eq.s32.totalorder %s16, 0
      %p37 = por %p35, %p36
      %p38 = scmp.ne.s32.totalorder %s24, %s25
      %p39 = scmp.eq.s32.totalorder %s17, 3
      %p40 = por %p38, %p39
      %p42 = scmp.ne.s32.totalorder %s25, %s41
      %p43 = scmp.eq.s32.totalorder %s17, 0
      %p44 = por %p42, %p43
      %s46 = sadd.s32 %s45, 1
      %p49 = scmp.eq.s32.totalorder %s11, 3
      %p50 = scmp.ne.s32.totalorder %s45, %s47
      %p51 = scmp.eq.s32.totalorder %s11, 0
      %p52 = por %p50, %p51
      %p53 = scmp.ne.s32.totalorder %s45, %s47
      %p54 = scmp.eq.s32.totalorder %s16, 3
      %p55 = por %p53, %p54
      %p56 = scmp.ne.s32.totalorder %s47, %s48
      %p57 = scmp.eq.s32.totalorder %s16, 0
      %p58 = por %p56, %p57
      %p59 = scmp.ne.s32.totalorder %s47, %s48
      %p60 = scmp.eq.s32.totalorder %s17, 3
      %p61 = por %p59, %p60
      %p63 = scmp.ne.s32.totalorder %s48, %s62
      %p64 = scmp.eq.s32.totalorder %s17, 0
      %p65 = por %p63, %p64
      %s66 = ssub.s32 %s11, %s18
      %p67 = scmp.eq.s32.totalorder %s66, 0
      %s69 = sadd.s32 %s68, 1
      %s70 = scalar_select %p67, %s68, %s69
      %p73 = pneg %p67
      %p74 = scmp.eq.s32.totalorder %s11, 3
      %p75 = por %p73, %p74
      %p76 = scmp.ne.s32.totalorder %s68, %s71
      %p77 = scmp.eq.s32.totalorder %s11, 0
      %p78 = por %p76, %p77
      %p79 = scmp.ne.s32.totalorder %s68, %s71
      %p80 = scmp.eq.s32.totalorder %s16, 3
      %p81 = por %p79, %p80
      %p82 = scmp.ne.s32.totalorder %s71, %s72
      %p83 = scmp.eq.s32.totalorder %s16, 0
      %p84 = por %p82, %p83
      %p85 = scmp.ne.s32.totalorder %s71, %s72
      %p86 = scmp.eq.s32.totalorder %s17, 3
      %p87 = por %p85, %p86
      %p89 = scmp.ne.s32.totalorder %s72, %s88
      %p90 = scmp.eq.s32.totalorder %s17, 0
      %p91 = por %p89, %p90
      %s93 = sadd.s32 %s92, 1
      %p96 = scmp.eq.s32.totalorder %s11, 3
      %p97 = scmp.ne.s32.totalorder %s92, %s94
      %p98 = scmp.eq.s32.totalorder %s11, 0
      %p99 = por %p97, %p98
      %p100 = scmp.ne.s32.totalorder %s92, %s94
      %p101 = scmp.eq.s32.totalorder %s16, 3
      %p102 = por %p100, %p101
      %p103 = scmp.ne.s32.totalorder %s94, %s95
      %p104 = scmp.eq.s32.totalorder %s16, 0
      %p105 = por %p103, %p104
      %p106 = scmp.ne.s32.totalorder %s94, %s95
      %p107 = scmp.eq.s32.totalorder %s17, 3
      %p108 = por %p106, %p107
      %p110 = scmp.ne.s32.totalorder %s95, %s109
      %p111 = scmp.eq.s32.totalorder %s17, 0
      %p112 = por %p110, %p111
      %s114 = sadd.s32 %s113, 1
      %p117 = scmp.eq.s32.totalorder %s11, 3
      %p118 = scmp.ne.s32.totalorder %s113, %s115
      %p119 = scmp.eq.s32.totalorder %s11, 0
      %p120 = por %p118, %p119
      %p121 = scmp.ne.s32.totalorder %s113, %s115
      %p122 = scmp.eq.s32.totalorder %s16, 3
      %p123 = por %p121, %p122
      %p124 = scmp.ne.s32.totalorder %s115, %s116
      %p125 = scmp.eq.s32.totalorder %s16, 0
      %p126 = por %p124, %p125
      %p127 = scmp.ne.s32.totalorder %s115, %s116
      %p128 = scmp.eq.s32.totalorder %s17, 3
      %p129 = por %p127, %p128
      %p131 = scmp.ne.s32.totalorder %s116, %s130
      %p132 = scmp.eq.s32.totalorder %s17, 0
      %p133 = por %p131, %p132
      %s134 = ssub.s32 %s11, %s18
      %p135 = scmp.eq.s32.totalorder %s134, 0
      %s137 = sadd.s32 %s136, 1
      %s138 = scalar_select %p135, %s136, %s137
      %p141 = pneg %p135
      %p142 = scmp.eq.s32.totalorder %s11, 3
      %p143 = por %p141, %p142
      %p144 = scmp.ne.s32.totalorder %s136, %s139
      %p145 = scmp.eq.s32.totalorder %s11, 0
      %p146 = por %p144, %p145
      %p147 = scmp.ne.s32.totalorder %s136, %s139
      %p148 = scmp.eq.s32.totalorder %s16, 3
      %p149 = por %p147, %p148
      %p150 = scmp.ne.s32.totalorder %s139, %s140
      %p151 = scmp.eq.s32.totalorder %s16, 0
      %p152 = por %p150, %p151
      %p153 = scmp.ne.s32.totalorder %s139, %s140
      %p154 = scmp.eq.s32.totalorder %s17, 3
      %p155 = por %p153, %p154
      %p157 = scmp.ne.s32.totalorder %s140, %s156
      %p158 = scmp.eq.s32.totalorder %s17, 0
      %p159 = por %p157, %p158
      %p160 = scmp.le.s32.totalorder 1, %s11
      %p161 = scmp.lt.s32.totalorder %s11, 5
      %p162 = pnand %p160, %p161
      %p163 = pneg %p162
      // Predicated region
      $region9: #{_lambda_.1} parent=5 // pred_check
        _
      $region10: #{_lambda_.1} parent=5 // pred_check_branch
        %165 = sbr.rel (%p162) target = $region12
      $region11: #{_lambda_.1} parent=5 // pred_region
        %s166 = ssub.s32 %s11, 1
        // Predicated region
        $region13: #{_lambda_.1} parent=11 // pred_check
          %p167 = pneg %p58
        $region14: #{_lambda_.1} parent=11 // pred_check_branch
          %169 = sbr.rel (%p167) target = $region16
        $region15: #{_lambda_.1} parent=11 // pred_region
          _
        $region16: #{_lambda_.1} parent=11 // pred_fallthru
          _
        // Predicated region
        $region17: #{_lambda_.1} parent=11 // pred_check
          %p170 = pneg %p105
        $region18: #{_lambda_.1} parent=11 // pred_check_branch
          %172 = sbr.rel (%p170) target = $region20
        $region19: #{_lambda_.1} parent=11 // pred_region
          _
        $region20: #{_lambda_.1} parent=11 // pred_fallthru
          _
        // Predicated region
        $region21: #{_lambda_.1} parent=11 // pred_check
          %p173 = pneg %p126
        $region22: #{_lambda_.1} parent=11 // pred_check_branch
          %175 = sbr.rel (%p173) target = $region24
        $region23: #{_lambda_.1} parent=11 // pred_region
          _
        $region24: #{_lambda_.1} parent=11 // pred_fallthru
          _
      $region12: #{_lambda_.1} parent=5 // pred_fallthru
        _
      %p176 = scmp.lt.s32.totalorder %s11, 4
      // Predicated region
      $region25: #{_lambda_.1} parent=5 // pred_check
        %p177 = pneg %p176
      $region26: #{_lambda_.1} parent=5 // pred_check_branch
        %179 = sbr.rel (%p177) target = $region28
      $region27: #{_lambda_.1} parent=5 // pred_region
        // Predicated region
        $region29: #{_lambda_.1} parent=27 // pred_check
          %p180 = pneg %p31
        $region30: #{_lambda_.1} parent=27 // pred_check_branch
          %182 = sbr.rel (%p180) target = $region32
        $region31: #{_lambda_.1} parent=27 // pred_region
          %p183 = scmp.lt.s32.totalorder %s11, 3
          %s184 = scalar_select %p183, %s11, 3
          %s185 = smul.addr %s184, 8
          %s186 = scalar_lea.vmem %s0, %s185
        $region32: #{_lambda_.1} parent=27 // pred_fallthru
          _
        // Predicated region
        $region33: #{_lambda_.1} parent=27 // pred_check
          %p187 = pneg %p78
        $region34: #{_lambda_.1} parent=27 // pred_check_branch
          %189 = sbr.rel (%p187) target = $region36
        $region35: #{_lambda_.1} parent=27 // pred_region
          %s190 = smul.u32 16, %s11
          %p191 = scmp.lt.s32.totalorder %s190, 63
          %s192 = scalar_select %p191, %s190, 63
          %s193 = smul.addr %s192, 8
          %s194 = scalar_lea.vmem %s2, %s193
          %s195 = smul.u32 16, %s11
        $region36: #{_lambda_.1} parent=27 // pred_fallthru
          _
      $region28: #{_lambda_.1} parent=5 // pred_fallthru
        _
      %p196 = scmp.le.s32.totalorder 1, %s11
      %p197 = scmp.lt.s32.totalorder %s11, 5
      %p198 = pnand %p196, %p197
      %p199 = pneg %p198
      // Predicated region
      $region37: #{_lambda_.1} parent=5 // pred_check
        _
      $region38: #{_lambda_.1} parent=5 // pred_check_branch
        %201 = sbr.rel (%p198) target = $region40
      $region39: #{_lambda_.1} parent=5 // pred_region
        %s202 = ssub.s32 %s11, 1
        %p203 = scmp.lt.s32.totalorder %s16, 3
        %s204 = scalar_select %p203, %s16, 3
        %s205 = smul.addr %s204, 8
        %s206 = scalar_lea.vmem %s0, %s205
        %p207 = pneg %p37
        %p208 = pneg %p34
        %p209 = pneg %p58
        %p210 = pneg %p55
        %s211 = smul.u32 16, %s16
        %p212 = scmp.lt.s32.totalorder %s211, 63
        %s213 = scalar_select %p212, %s211, 63
        %s214 = smul.addr %s213, 8
        %s215 = scalar_lea.vmem %s2, %s214
        %p216 = pneg %p84
        %p217 = pneg %p81
        %p218 = pneg %p105
        %p219 = pneg %p102
        %p220 = pneg %p126
        %p221 = pneg %p123
        %p222 = pneg %p152
        %p223 = pneg %p149
        %s224 = sand.u32 %s139, 1
        %s225 = sand.u32 %s139, 1
        %s226 = smul.addr %s225, 48
        %s227 = scalar_lea.vmem [#allocation2], %s226
        %p228 = scmp.lt.s32.totalorder %s16, 3
        %s229 = scalar_select %p228, %s16, 3
        %s230 = smul.addr %s229, 8
        %s231 = scalar_lea.vmem %s0, %s230
        %s232 = smul.u32 16, %s16
        %p233 = scmp.lt.s32.totalorder %s232, 63
        %s234 = scalar_select %p233, %s232, 63
        %s235 = smul.addr %s234, 8
        %s236 = scalar_lea.vmem %s2, %s235
        %s237 = smul.u32 16, %s16
        %v238 = vld [vmem:[%s231] sm:$0xff]
        %v239 = vmul.f32 %v238, 1.442695
        %v240 = vpow.pop %v239
        %v241 = vld [vmem:[%s1] sm:$0xff]
        %243 = vset.pattern.permute.xlu0 0
        %244 = vperm.xlu0 %243, %v241
        %v245 = vpop.permute.xlu0 %244
        %v247 = vlaneseq
        %v248 = vshrl.u32 %v247, 7
        %v249 = vsub.s32 3, %v248
        %v250 = vrot.slane %v240, %v249
        %v251 = vmul.f32 %v245, %v250
        %252 = vset.pattern.permute.xlu0 1
        %253 = vperm.xlu0 %252, %v241
        %v254 = vpop.permute.xlu0 %253
        %v256 = vlaneseq
        %v257 = vshrl.u32 %v256, 7
        %v258 = vsub.s32 4, %v257
        %v259 = vrot.slane %v240, %v258
        %v260 = vmul.f32 %v254, %v259
        %261 = vset.pattern.permute.xlu0 2
        %262 = vperm.xlu0 %261, %v241
        %v263 = vpop.permute.xlu0 %262
        %v265 = vlaneseq
        %v266 = vshrl.u32 %v265, 7
        %v267 = vsub.s32 5, %v266
        %v268 = vrot.slane %v240, %v267
        %v269 = vmul.f32 %v263, %v268
        %v270 = vlaneseq
        %v271 = vshrl.u32 %v270, 7
        %v272 = vsub.s32 7, %v271
        %v273 = vrot.slane %v238, %v272
        %v274 = vmul.f32 %v273, %v251
        %v275 = vlaneseq
        %v276 = vshrl.u32 %v275, 7
        %v277 = vsub.s32 6, %v276
        %v278 = vrot.slane %v238, %v277
        %v279 = vmul.f32 %v278, %v260
        %v280 = vsub.f32 %v274, %v279
        %v281 = vlaneseq
        %v282 = vshrl.u32 %v281, 7
        %v283 = vsub.s32 0, %v282
        %v284 = vrot.slane %v238, %v283
        %v285 = vadd.f32 %v280, %v284
        %286 = vst [vmem:[%s227] sm:$0xff] %v285
        %v287 = vmul.f32 %v278, %v251
        %v288 = vmul.f32 %v273, %v260
        %v289 = vadd.f32 %v287, %v288
        %v290 = vlaneseq
        %v291 = vshrl.u32 %v290, 7
        %v292 = vsub.s32 1, %v291
        %v293 = vrot.slane %v238, %v292
        %v294 = vadd.f32 %v289, %v293
        %s295 = scalar_lea.vmem %s227, 16 [#allocation2]
        %296 = vst [vmem:[%s295] sm:$0xff] %v294
        %v297 = vlaneseq
        %v298 = vshrl.u32 %v297, 7
        %v299 = vsub.s32 2, %v298
        %v300 = vrot.slane %v238, %v299
        %v301 = vadd.f32 %v269, %v300
        %s302 = scalar_lea.vmem %s227, 32 [#allocation2]
        %303 = vst [vmem:[%s302] sm:$0xff] %v301
        %v304 = vld [vmem:[%s3] sm:$0xff]
        %v305 = vld [vmem:[%s3 + $0x8] sm:$0xff]
        %v306 = vld [vmem:[%s3 + $0x10] sm:$0xff]
        %v307 = vld [vmem:[%s236] sm:$0xff]
        %v308 = vld [vmem:[%s236 + $0x8] sm:$0xff]
        %v309 = vld [vmem:[%s236 + $0x10] sm:$0xff]
        %v310 = vld [vmem:[%s236 + $0x18] sm:$0xff]
        %v311 = vld [vmem:[%s236 + $0x20] sm:$0xff]
        %v312 = vld [vmem:[%s236 + $0x28] sm:$0xff]
        %v313 = vld [vmem:[%s236 + $0x30] sm:$0xff]
        %v314 = vld [vmem:[%s236 + $0x38] sm:$0xff]
        %v315 = vld [vmem:[%s236 + $0x40] sm:$0xff]
        %v316 = vld [vmem:[%s236 + $0x48] sm:$0xff]
        %v317 = vld [vmem:[%s236 + $0x50] sm:$0xff]
        %v318 = vld [vmem:[%s236 + $0x58] sm:$0xff]
        %v319 = vld [vmem:[%s236 + $0x60] sm:$0xff]
        %v320 = vld [vmem:[%s236 + $0x68] sm:$0xff]
        %v321 = vld [vmem:[%s236 + $0x70] sm:$0xff]
        %v322 = vld [vmem:[%s236 + $0x78] sm:$0xff]
        %v323 = vld [vmem:[%s4] sm:$0xff]
        %v324 = vld [vmem:[%s4 + $0x8] sm:$0xff]
        %v325 = vld [vmem:[%s4 + $0x10] sm:$0xff]
        %327 = vset.pattern.permute.xlu0 0
        %328 = vperm.xlu0 %327, %v323
        %v329 = vpop.permute.xlu0 %328
        %332 = vset.pattern.permute.xlu0 0
        %333 = vperm.xlu0 %332, %v324
        %v334 = vpop.permute.xlu0 %333
        %337 = vset.pattern.permute.xlu0 0
        %338 = vperm.xlu0 %337, %v325
        %v339 = vpop.permute.xlu0 %338
        %vm341 = vcmask 261120
        %v343 = vsel %vm341, %v304, 0
        %v346 = vsel %vm341, %v305, 0
        %v349 = vsel %vm341, %v306, 0
        %v352 = vsel %vm341, %v307, 0
        %v355 = vsel %vm341, %v308, 0
        %v358 = vsel %vm341, %v309, 0
        %v361 = vsel %vm341, %v310, 0
        %v364 = vsel %vm341, %v311, 0
        %v367 = vsel %vm341, %v312, 0
        %v370 = vsel %vm341, %v313, 0
        %v373 = vsel %vm341, %v314, 0
        %v376 = vsel %vm341, %v315, 0
        %v379 = vsel %vm341, %v316, 0
        %v382 = vsel %vm341, %v317, 0
        %v385 = vsel %vm341, %v318, 0
        %v388 = vsel %vm341, %v319, 0
        %v391 = vsel %vm341, %v320, 0
        %v394 = vsel %vm341, %v321, 0
        %v397 = vsel %vm341, %v322, 0
        %399 = vmatprep.subr.mxu0 0.0
        %400 = vmatpush1.xpose.msra.mxu0 %v397
        %401 = vmatprep.subr.mxu0 0.0
        %402 = vmatpush1.xpose.msra.mxu0 %v394
        %403 = vmatprep.subr.mxu0 0.0
        %404 = vmatpush1.xpose.msra.mxu0 %v391
        %405 = vmatprep.subr.mxu0 0.0
        %406 = vmatpush1.xpose.msra.mxu0 %v388
        %407 = vmatprep.subr.mxu0 0.0
        %408 = vmatpush1.xpose.msra.mxu0 %v385
        %409 = vmatprep.subr.mxu0 0.0
        %410 = vmatpush1.xpose.msra.mxu0 %v382
        %411 = vmatprep.subr.mxu0 0.0
        %412 = vmatpush1.xpose.msra.mxu0 %v379
        %413 = vmatprep.subr.mxu0 0.0
        %414 = vmatpush1.xpose.msra.mxu0 %v376
        %415 = vmatprep.subr.mxu0 0.0
        %416 = vmatpush1.xpose.msra.mxu0 %v373
        %417 = vmatprep.subr.mxu0 0.0
        %418 = vmatpush1.xpose.msra.mxu0 %v370
        %419 = vmatprep.subr.mxu0 0.0
        %420 = vmatpush1.xpose.msra.mxu0 %v367
        %421 = vmatprep.subr.mxu0 0.0
        %422 = vmatpush1.xpose.msra.mxu0 %v364
        %423 = vmatprep.subr.mxu0 0.0
        %424 = vmatpush1.xpose.msra.mxu0 %v361
        %425 = vmatprep.subr.mxu0 0.0
        %426 = vmatpush1.xpose.msra.mxu0 %v358
        %427 = vmatprep.subr.mxu0 0.0
        %428 = vmatpush1.xpose.msra.mxu0 %v355
        %429 = vmatprep.subr.mxu0 0.0
        %430 = vmatpush1.xpose.msra.mxu0 %v352
        %431 = vmatprep.subr.mxu0 0.0
        %432 = vmatpush2.xpose.msra.mxu0 0.0
        %433 = vmatprep.subr.mxu0 0.0
        %434 = vmatpush2.xpose.msra.mxu0 0.0
        %435 = vmatprep.subr.mxu0 0.0
        %436 = vmatpush2.xpose.msra.mxu0 0.0
        %437 = vmatprep.subr.mxu0 0.0
        %438 = vmatpush2.xpose.msra.mxu0 0.0
        %439 = vmatprep.subr.mxu0 0.0
        %440 = vmatpush2.xpose.msra.mxu0 0.0
        %441 = vmatprep.subr.mxu0 0.0
        %442 = vmatpush2.xpose.msra.mxu0 0.0
        %443 = vmatprep.subr.mxu0 0.0
        %444 = vmatpush2.xpose.msra.mxu0 0.0
        %445 = vmatprep.subr.mxu0 0.0
        %446 = vmatpush2.xpose.msra.mxu0 0.0
        %447 = vmatprep.subr.mxu0 0.0
        %448 = vmatpush2.xpose.msra.mxu0 0.0
        %449 = vmatprep.subr.mxu0 0.0
        %450 = vmatpush2.xpose.msra.mxu0 0.0
        %451 = vmatprep.subr.mxu0 0.0
        %452 = vmatpush2.xpose.msra.mxu0 0.0
        %453 = vmatprep.subr.mxu0 0.0
        %454 = vmatpush2.xpose.msra.mxu0 0.0
        %455 = vmatprep.subr.mxu0 0.0
        %456 = vmatpush2.xpose.msra.mxu0 0.0
        %457 = vmatprep.subr.mxu0 0.0
        %458 = vmatpush2.xpose.msra.mxu0 0.0
        %459 = vmatprep.subr.mxu0 0.0
        %460 = vmatpush2.xpose.msra.mxu0 0.0
        %461 = vmatprep.subr.mxu0 0.0
        %462 = vmatpush2.xpose.msra.mxu0 0.0
        %463 = vmatprep.mubr.f32.mxu0 0.0
        %464 = vmatmul.mubr.f32.gmra.mxu0 %v343
        %v465 = vpop.f32.mrf.mxu0
        %v466 = vadd.f32 %v329, %v465
        %v467 = vpop.f32.mrf.mxu0
        %468 = vmatprep.mubr.f32.mxu0 0.0
        %469 = vmatmul.mubr.f32.gmra.mxu0 %v346
        %v470 = vpop.f32.mrf.mxu0
        %v471 = vadd.f32 %v334, %v470
        %v472 = vpop.f32.mrf.mxu0
        %473 = vmatprep.mubr.f32.mxu0 0.0
        %474 = vmatmul.mubr.f32.gmra.mxu0 %v349
        %v475 = vpop.f32.mrf.mxu0
        %v476 = vadd.f32 %v339, %v475
        %v477 = vpop.f32.mrf.mxu0
        %478 = vdwg.mxu0
        %v479 = vxor.u32 %v466, 2147483648
        %v480 = vxor.u32 %v471, 2147483648
        %v481 = vxor.u32 %v476, 2147483648
        %v482 = vmul.f32 %v479, 1.442695
        %v483 = vpow.pop %v482
        %v484 = vmul.f32 %v480, 1.442695
        %v485 = vpow.pop %v484
        %v486 = vmul.f32 %v481, 1.442695
        %v487 = vpow.pop %v486
        %v488 = vadd.f32 %v483, 1.0
        %v489 = vadd.f32 %v485, 1.0
        %v490 = vadd.f32 %v487, 1.0
        %v491 = vrcp.pop %v488
        %v492 = vmul.f32 1.0, %v491
        %v493 = vrcp.pop %v489
        %v494 = vmul.f32 1.0, %v493
        %v495 = vrcp.pop %v490
        %v496 = vmul.f32 1.0, %v495
        %v497 = vsub.f32 %v492, 0.5
        %v498 = vsub.f32 %v494, 0.5
        %v499 = vsub.f32 %v496, 0.5
        %v500 = vmul.f32 %v497, %v250
        %v501 = vmul.f32 %v498, %v259
        %v502 = vmul.f32 %v499, %v268
        %v503 = vmul.f32 %v273, %v500
        %v504 = vmul.f32 %v278, %v501
        %v505 = vsub.f32 %v503, %v504
        %v506 = vadd.f32 %v505, %v284
        %507 = vst [vmem:[%s227 + $0x8] sm:$0xff] %v506
        %v508 = vmul.f32 %v278, %v500
        %v509 = vmul.f32 %v273, %v501
        %v510 = vadd.f32 %v508, %v509
        %v511 = vadd.f32 %v510, %v293
        %512 = vst [vmem:[%s295 + $0x8] sm:$0xff] %v511
        %v513 = vadd.f32 %v502, %v300
        %514 = vst [vmem:[%s302 + $0x8] sm:$0xff] %v513
        %s515 = sand.u32 %s139, 1
        %s516 = sand.u32 %s139, 1
        %s517 = smul.addr %s516, 48
        %s518 = scalar_lea.vmem [#allocation2], %s517
        // Predicated region
        $region41: #{_lambda_.1} parent=39 // pred_check
          %p519 = pneg %p149
        $region42: #{_lambda_.1} parent=39 // pred_check_branch
          %521 = sbr.rel (%p519) target = $region44
        $region43: #{_lambda_.1} parent=39 // pred_region
          %s522 = smul.addr %s16, 8
          %s523 = scalar_lea.vmem %s5, %s522
          // Predicated region
          $region45: #{_lambda_.1} parent=43 // pred_check
            _
          $region46: #{_lambda_.1} parent=43 // pred_check_branch
            %525 = sbr.rel (0) target = $region48
          $region47: #{_lambda_.1} parent=43 // pred_region
            // Predicated region
            $region49: #{_lambda_.1} parent=47 // pred_check
              _
            $region50: #{_lambda_.1} parent=47 // pred_check_branch
              %527 = sbr.rel (0) target = $region52
            $region51: #{_lambda_.1} parent=47 // pred_region
              // Predicated region
              $region64: #{_lambda_.1} parent=51 // pred_check
                _
              $region65: #{_lambda_.1} parent=51 // pred_check_branch
                %553 = sbr.rel (0) target = $region67
              $region66: #{_lambda_.1} parent=51 // pred_region
                loop: start=0, step=1, limit=1
                $region68: #{_lambda_.1} parent=66 // loop_pre_header
                  _
                $region69: #{_lambda_.1} parent=66 // loop_header
                  %s555 = sphi 0, %s559
                  %p556 = scmp.ge.s32.totalorder %s555, 1
                  %s560 = sphi %s518, %s518
                  %s561 = sphi %s523, %s523
                $region70: #{_lambda_.1} parent=66 // loop_header_branch
                  %558 = sbr.rel (%p556) target = $region74
                $region71: #{_lambda_.1} parent=66 // loop_body
                  %v562 = vld [vmem:[%s560] sm:$0xff]
                  %563 = vst [vmem:[%s561] sm:$0xff] %v562
                  %v564 = vld [vmem:[%s560 + $0x8] sm:$0xff]
                  %565 = vst [vmem:[%s561 + $0x20] sm:$0xff] %v564
                  %v566 = vld [vmem:[%s560 + $0x10] sm:$0xff]
                  %567 = vst [vmem:[%s561 + $0x40] sm:$0xff] %v566
                  %v568 = vld [vmem:[%s560 + $0x18] sm:$0xff]
                  %569 = vst [vmem:[%s561 + $0x60] sm:$0xff] %v568
                  %v570 = vld [vmem:[%s560 + $0x20] sm:$0xff]
                  %571 = vst [vmem:[%s561 + $0x80] sm:$0xff] %v570
                  %v572 = vld [vmem:[%s560 + $0x28] sm:$0xff]
                  %573 = vst [vmem:[%s561 + $0xa0] sm:$0xff] %v572
                $region72: #{_lambda_.1} parent=66 // loop_footer
                  %s559 = sadd.s32 1, %s555
                $region73: #{_lambda_.1} parent=66 // loop_footer_branch
                  %554 = sbr.rel target = $region69
                $region74: #{_lambda_.1} parent=66 // loop_exit
                  _
              $region67: #{_lambda_.1} parent=51 // pred_fallthru
                _
              // Predicated region
              $region75: #{_lambda_.1} parent=51 // pred_check
                _
              $region76: #{_lambda_.1} parent=51 // pred_check_branch
                %575 = sbr.rel target = $region78
              $region77: #{_lambda_.1} parent=51 // pred_region
                _
              $region78: #{_lambda_.1} parent=51 // pred_fallthru
                _
            $region52: #{_lambda_.1} parent=47 // pred_fallthru
              _
            // Predicated region
            $region53: #{_lambda_.1} parent=47 // pred_check
              _
            $region54: #{_lambda_.1} parent=47 // pred_check_branch
              %529 = sbr.rel target = $region56
            $region55: #{_lambda_.1} parent=47 // pred_region
              %s531 = ssub.s32 256, 1
              loop: start=0, step=1, limit=1
              $region57: #{_lambda_.1} parent=55 // loop_pre_header
                _
              $region58: #{_lambda_.1} parent=55 // loop_header
                %s533 = sphi 0, %s537
                %p534 = scmp.ge.s32.totalorder %s533, 1
                %s538 = sphi %s518, %s518
                %s539 = sphi %s523, %s523
              $region59: #{_lambda_.1} parent=55 // loop_header_branch
                %536 = sbr.rel (%p534) target = $region63
              $region60: #{_lambda_.1} parent=55 // loop_body
                %v540 = vld [vmem:[%s538] sm:%s531]
                %541 = vst [vmem:[%s539] sm:%s531] %v540
                %v542 = vld [vmem:[%s538 + $0x8] sm:%s531]
                %543 = vst [vmem:[%s539 + $0x20] sm:%s531] %v542
                %v544 = vld [vmem:[%s538 + $0x10] sm:%s531]
                %545 = vst [vmem:[%s539 + $0x40] sm:%s531] %v544
                %v546 = vld [vmem:[%s538 + $0x18] sm:%s531]
                %547 = vst [vmem:[%s539 + $0x60] sm:%s531] %v546
                %v548 = vld [vmem:[%s538 + $0x20] sm:%s531]
                %549 = vst [vmem:[%s539 + $0x80] sm:%s531] %v548
                %v550 = vld [vmem:[%s538 + $0x28] sm:%s531]
                %551 = vst [vmem:[%s539 + $0xa0] sm:%s531] %v550
              $region61: #{_lambda_.1} parent=55 // loop_footer
                %s537 = sadd.s32 1, %s533
              $region62: #{_lambda_.1} parent=55 // loop_footer_branch
                %532 = sbr.rel target = $region58
              $region63: #{_lambda_.1} parent=55 // loop_exit
                _
            $region56: #{_lambda_.1} parent=47 // pred_fallthru
              _
          $region48: #{_lambda_.1} parent=43 // pred_fallthru
            _
          %576 = vnop
        $region44: #{_lambda_.1} parent=39 // pred_fallthru
          _
      $region40: #{_lambda_.1} parent=5 // pred_fallthru
        _
      %p577 = scmp.le.s32.totalorder 2, %s11
      // Predicated region
      $region79: #{_lambda_.1} parent=5 // pred_check
        %p578 = pneg %p577
      $region80: #{_lambda_.1} parent=5 // pred_check_branch
        %580 = sbr.rel (%p578) target = $region82
      $region81: #{_lambda_.1} parent=5 // pred_region
        %s581 = ssub.s32 %s11, 2
        // Predicated region
        $region83: #{_lambda_.1} parent=81 // pred_check
          %p582 = pneg %p155
        $region84: #{_lambda_.1} parent=81 // pred_check_branch
          %584 = sbr.rel (%p582) target = $region86
        $region85: #{_lambda_.1} parent=81 // pred_region
          %s585 = sand.u32 %s140, 1
          %s586 = sand.u32 %s140, 1
          %s587 = smul.addr %s586, 48
          %s588 = scalar_lea.vmem [#allocation2], %s587
        $region86: #{_lambda_.1} parent=81 // pred_fallthru
          _
      $region82: #{_lambda_.1} parent=5 // pred_fallthru
        _
    $region6: #{_lambda_.1} parent=1 // loop_footer
      %s15 = sadd.s32 1, %s11
    $region7: #{_lambda_.1} parent=1 // loop_footer_branch
      %10 = sbr.rel target = $region3
    $region8: #{_lambda_.1} parent=1 // loop_exit
      _

</llo_original>
